<compile_context>
chip_gen: v7x
topology: tpu7x:2x2x1
jax: 0.10.0
libtpu: 0.0.40
codegen_flags: <defaults>
</compile_context>

<pallas_src>
import functools
import math

import jax
import jax.numpy as jnp
from jax.experimental import pallas as pl
from jax.experimental.pallas import tpu as pltpu


def _pick_tile(dim, cap):
    """Largest tile <= cap that divides dim and is a multiple of 8 (or the full dim)."""
    for t in range(min(dim, cap), 0, -1):
        if dim % t == 0 and (t % 8 == 0 or t == dim):
            return t
    return dim


# ---------------------------------------------------------------------------
# Stage 1: fused QKV projection  (B*T, E) @ (E, 3H) -> q, k, v of (B*T, H)
# ---------------------------------------------------------------------------
def _qkv_proj_kernel(x_ref, w_ref, q_ref, k_ref, v_ref, *, head_size, scale):
    # Single MXU pass for all three projections, f32 accumulation.
    qkv = jnp.dot(x_ref[...], w_ref[...], preferred_element_type=jnp.float32)
    h = head_size
    # Fold the 1/sqrt(H) attention scale into q.
    q_ref[...] = (qkv[:, :h] * scale).astype(q_ref.dtype)
    k_ref[...] = qkv[:, h:2 * h].astype(k_ref.dtype)
    v_ref[...] = qkv[:, 2 * h:].astype(v_ref.dtype)


def _qkv_project(x2d, w_qkv, head_size, scale):
    rows, e = x2d.shape
    h3 = w_qkv.shape[1]
    tm = _pick_tile(rows, 512)
    kernel = functools.partial(_qkv_proj_kernel, head_size=head_size, scale=scale)
    out_sds = jax.ShapeDtypeStruct((rows, head_size), x2d.dtype)
    return pl.pallas_call(
        kernel,
        out_shape=(out_sds, out_sds, out_sds),
        grid_spec=pltpu.PrefetchScalarGridSpec(
            num_scalar_prefetch=0,
            grid=(rows // tm,),
            in_specs=[
                pl.BlockSpec((tm, e), lambda i: (i, 0)),
                pl.BlockSpec((e, h3), lambda i: (0, 0)),
            ],
            out_specs=[
                pl.BlockSpec((tm, head_size), lambda i: (i, 0)),
                pl.BlockSpec((tm, head_size), lambda i: (i, 0)),
                pl.BlockSpec((tm, head_size), lambda i: (i, 0)),
            ],
        ),
        compiler_params=pltpu.CompilerParams(
            dimension_semantics=("parallel",)),
    )(x2d, w_qkv)


# ---------------------------------------------------------------------------
# Stage 2: flash-attention (online softmax over KV blocks).
# ---------------------------------------------------------------------------
def _flash_attn_kernel(q_ref, k_ref, v_ref, o_ref, m_sc, l_sc, acc_sc):
    kv = pl.program_id(2)

    @pl.when(kv == 0)
    def _init():
        m_sc[...] = jnp.full(m_sc.shape, -jnp.inf, dtype=m_sc.dtype)
        l_sc[...] = jnp.zeros(l_sc.shape, dtype=l_sc.dtype)
        acc_sc[...] = jnp.zeros(acc_sc.shape, dtype=acc_sc.dtype)

    q = q_ref[...]  # (Tq, H), already scaled by 1/sqrt(H)
    k = k_ref[...]  # (Tk, H)
    # s = q @ k^T without materializing the transpose: contract on the H axis.
    s = jax.lax.dot_general(
        q, k, dimension_numbers=(((1,), (1,)), ((), ())),
        preferred_element_type=jnp.float32)  # (Tq, Tk) f32

    m_prev = m_sc[...]
    m_new = jnp.maximum(m_prev, jnp.max(s, axis=-1, keepdims=True))
    alpha = jnp.exp(m_prev - m_new)
    p = jnp.exp(s - m_new)  # softmax numerator, f32
    l_sc[...] = alpha * l_sc[...] + jnp.sum(p, axis=-1, keepdims=True)
    acc_sc[...] = alpha * acc_sc[...] + jnp.dot(
        p.astype(v_ref.dtype), v_ref[...], preferred_element_type=jnp.float32)
    m_sc[...] = m_new

    @pl.when(kv == pl.num_programs(2) - 1)
    def _finalize():
        # Deferred normalization: one (Tq, H) multiply; reciprocal goes to EUP.
        inv_l = pl.reciprocal(l_sc[...], approx=True)
        o_ref[...] = (acc_sc[...] * inv_l).astype(o_ref.dtype)


def masked_self_attention(x, wq_t, wk_t, wv_t, *, q_block=256, kv_block=512):
    """x: (B, T, E); wq_t/wk_t/wv_t: (E, H) (transposed PyTorch Linear weights)."""
    b, t, e = x.shape
    h = wq_t.shape[1]
    scale = 1.0 / math.sqrt(h)

    # Fuse the three projection weights into one (E, 3H) operand, in x's dtype
    # (pass bf16 x/weights to use the bf16 MXU path; accumulation stays f32).
    w_qkv = jnp.concatenate([wq_t, wk_t, wv_t], axis=1).astype(x.dtype)

    q2d, k2d, v2d = _qkv_project(x.reshape(b * t, e), w_qkv, h, scale)
    q = q2d.reshape(b, t, h)
    k = k2d.reshape(b, t, h)
    v = v2d.reshape(b, t, h)

    tq = _pick_tile(t, q_block)
    tk = _pick_tile(t, kv_block)

    return pl.pallas_call(
        _flash_attn_kernel,
        out_shape=jax.ShapeDtypeStruct((b, t, h), x.dtype),
        grid_spec=pltpu.PrefetchScalarGridSpec(
            num_scalar_prefetch=0,
            grid=(b, t // tq, t // tk),
            in_specs=[
                pl.BlockSpec((pl.Squeezed(), tq, h), lambda bi, qi, ki: (bi, qi, 0)),
                pl.BlockSpec((pl.Squeezed(), tk, h), lambda bi, qi, ki: (bi, ki, 0)),
                pl.BlockSpec((pl.Squeezed(), tk, h), lambda bi, qi, ki: (bi, ki, 0)),
            ],
            out_specs=pl.BlockSpec(
                (pl.Squeezed(), tq, h), lambda bi, qi, ki: (bi, qi, 0)),
            scratch_shapes=[
                pltpu.VMEM((tq, 1), jnp.float32),  # running max m
                pltpu.VMEM((tq, 1), jnp.float32),  # running denominator l
                pltpu.VMEM((tq, h), jnp.float32),  # output accumulator
            ],
        ),
        compiler_params=pltpu.CompilerParams(
            dimension_semantics=("parallel", "parallel", "arbitrary")),
    )(q, k, v)


def _reference(x, wq_t, wk_t, wv_t):
    xf = x.astype(jnp.float32)
    q = xf @ wq_t.astype(jnp.float32)
    k = xf @ wk_t.astype(jnp.float32)
    v = xf @ wv_t.astype(jnp.float32)
    s = jnp.einsum("btd,bsd->bts", q, k) / math.sqrt(q.shape[-1])
    return jax.nn.softmax(s, axis=-1) @ v


if __name__ == "__main__":
    B, T, n_embd, head_size = 2, 8, 32, 16

    key = jax.random.PRNGKey(0)
    kx, kq, kk, kv = jax.random.split(key, 4)

    x = jax.random.normal(kx, (B, T, n_embd), dtype=jnp.float32)

    # nn.Linear-style init U(-1/sqrt(fan_in), 1/sqrt(fan_in)); weights stored
    # pre-transposed as (E, H) = W.T.
    bound = 1.0 / math.sqrt(n_embd)
    wq_t = jax.random.uniform(kq, (n_embd, head_size), jnp.float32, -bound, bound)
    wk_t = jax.random.uniform(kk, (n_embd, head_size), jnp.float32, -bound, bound)
    wv_t = jax.random.uniform(kv, (n_embd, head_size), jnp.float32, -bound, bound)

    # f32 path. Tolerance budget: exact f32 matmuls/softmax; only the deferred
    # normalization uses the EUP approximate reciprocal (~1e-4 relative).
    out = jax.block_until_ready(masked_self_attention(x, wq_t, wk_t, wv_t))
    ref = _reference(x, wq_t, wk_t, wv_t)
    assert out.shape == (B, T, head_size)
    assert jnp.allclose(out, ref, atol=3e-3, rtol=3e-3), "f32 mismatch vs reference"

    # bf16 MXU-operand path (throughput + DMA win on v5e/v6e/v7x); softmax and
    # accumulation remain f32 inside the kernels.
    xb = x.astype(jnp.bfloat16)
    wqb, wkb, wvb = (w.astype(jnp.bfloat16) for w in (wq_t, wk_t, wv_t))
    out_bf = jax.block_until_ready(masked_self_attention(xb, wqb, wkb, wvb))
    ref_bf = _reference(xb, wqb, wkb, wvb)
    assert jnp.allclose(out_bf.astype(jnp.float32), ref_bf, atol=5e-2, rtol=5e-2), \
        "bf16 mismatch vs reference"

    print("KERNEL_OK")
</pallas_src>

<mosaic_0001>
module attributes {stable_mosaic.version = 11 : i64} {
  func.func @_qkv_proj_kernel(%arg0: i32, %arg1: memref<16x32xf32, #tpu.memory_space<vmem>>, %arg2: memref<32x48xf32, #tpu.memory_space<vmem>>, %arg3: memref<16x16xf32, #tpu.memory_space<vmem>>, %arg4: memref<16x16xf32, #tpu.memory_space<vmem>>, %arg5: memref<16x16xf32, #tpu.memory_space<vmem>>) attributes {dimension_semantics = [#tpu.dimension_semantics<parallel>], iteration_bounds = array<i64: 1>, scalar_prefetch = 0 : i64, scratch_operands = 0 : i64, tpu.core_type = #tpu.core_type<tc>, window_params = [{transform_indices = @transform_0, window_bounds = array<i64: 16, 32>}, {pipeline_mode = #tpu.pipeline_mode<synchronous>, transform_indices = @transform_1, window_bounds = array<i64: 32, 48>}, {transform_indices = @transform_2, window_bounds = array<i64: 16, 16>}, {transform_indices = @transform_3, window_bounds = array<i64: 16, 16>}, {transform_indices = @transform_4, window_bounds = array<i64: 16, 16>}]} {
    %c0 = arith.constant 0 : index
    %c0_0 = arith.constant 0 : index
    %0 = vector.load %arg1[%c0, %c0_0] : memref<16x32xf32, #tpu.memory_space<vmem>>, vector<16x32xf32>
    %c0_1 = arith.constant 0 : index
    %c0_2 = arith.constant 0 : index
    %1 = vector.load %arg2[%c0_1, %c0_2] : memref<32x48xf32, #tpu.memory_space<vmem>>, vector<32x48xf32>
    %cst = arith.constant dense<0.000000e+00> : vector<16x48xf32>
    %2 = tpu.matmul %0, %1, %cst {dimension_numbers = #tpu.dot_dimension_numbers<[1], [0], [0], [1], [0, 0, 1, 1], [], []>} : vector<16x32xf32>, vector<32x48xf32>, vector<16x48xf32> -> vector<16x48xf32>
    %3 = vector.extract_strided_slice %2 {offsets = [0, 0], sizes = [16, 16], strides = [1, 1]} : vector<16x48xf32> to vector<16x16xf32>
    %cst_3 = arith.constant 2.500000e-01 : f32
    %4 = vector.broadcast %cst_3 : f32 to vector<16x16xf32>
    %5 = arith.mulf %3, %4 : vector<16x16xf32>
    %c0_4 = arith.constant 0 : index
    %c0_5 = arith.constant 0 : index
    %6 = vector.load %arg3[%c0_4, %c0_5] : memref<16x16xf32, #tpu.memory_space<vmem>>, vector<16x16xf32>
    tpu.vector_store %arg3[%c0_4, %c0_5], %5 {strides = array<i32>} : memref<16x16xf32, #tpu.memory_space<vmem>>, vector<16x16xf32>,
    %7 = vector.extract_strided_slice %2 {offsets = [0, 16], sizes = [16, 16], strides = [1, 1]} : vector<16x48xf32> to vector<16x16xf32>
    %c0_6 = arith.constant 0 : index
    %c0_7 = arith.constant 0 : index
    %8 = vector.load %arg4[%c0_6, %c0_7] : memref<16x16xf32, #tpu.memory_space<vmem>>, vector<16x16xf32>
    tpu.vector_store %arg4[%c0_6, %c0_7], %7 {strides = array<i32>} : memref<16x16xf32, #tpu.memory_space<vmem>>, vector<16x16xf32>,
    %9 = vector.extract_strided_slice %2 {offsets = [0, 32], sizes = [16, 16], strides = [1, 1]} : vector<16x48xf32> to vector<16x16xf32>
    %c0_8 = arith.constant 0 : index
    %c0_9 = arith.constant 0 : index
    %10 = vector.load %arg5[%c0_8, %c0_9] : memref<16x16xf32, #tpu.memory_space<vmem>>, vector<16x16xf32>
    tpu.vector_store %arg5[%c0_8, %c0_9], %9 {strides = array<i32>} : memref<16x16xf32, #tpu.memory_space<vmem>>, vector<16x16xf32>,
    return
  }
  func.func @transform_0(%arg0: i32) -> (i32, i32) {
    %c0_i32 = arith.constant 0 : i32
    %c0_i32_0 = arith.constant 0 : i32
    return %arg0, %c0_i32 : i32, i32
  }
  func.func @transform_1(%arg0: i32) -> (i32, i32) {
    %c0_i32 = arith.constant 0 : i32
    %c0_i32_0 = arith.constant 0 : i32
    %c0_i32_1 = arith.constant 0 : i32
    return %c0_i32, %c0_i32_0 : i32, i32
  }
  func.func @transform_2(%arg0: i32) -> (i32, i32) {
    %c0_i32 = arith.constant 0 : i32
    %c0_i32_0 = arith.constant 0 : i32
    return %arg0, %c0_i32 : i32, i32
  }
  func.func @transform_3(%arg0: i32) -> (i32, i32) {
    %c0_i32 = arith.constant 0 : i32
    %c0_i32_0 = arith.constant 0 : i32
    return %arg0, %c0_i32 : i32, i32
  }
  func.func @transform_4(%arg0: i32) -> (i32, i32) {
    %c0_i32 = arith.constant 0 : i32
    %c0_i32_0 = arith.constant 0 : i32
    return %arg0, %c0_i32 : i32, i32
  }
}

</mosaic_0001>

<llo_original>
// kernel: tpu_custom_call.1
$region0: #{tpu_custom_call.1}
  #allocation0 [shape = 'u32[]', space=smem, size = 0x4, offset = 0x4, fixed_abs, tag = 'smem constant byte address 0x4 - core index']
  #allocation1 [shape = 'u32[144,128]{1,0:T(1,128)}', space=vmem, size = 0x12000, scoped, tag = 'internal scratch']
  %s0 = inlined_call_operand.hbm [shape: f32[16,32], index: 0, kind: input, shape index: {}]
  %s1 = inlined_call_operand.hbm [shape: f32[32,48], index: 1, kind: input, shape index: {}]
  %s2 = inlined_call_operand.hbm [shape: f32[16,16], index: 2, kind: output, shape index: {0}]
  %s3 = inlined_call_operand.hbm [shape: f32[16,16], index: 3, kind: output, shape index: {1}]
  %s4 = inlined_call_operand.hbm [shape: f32[16,16], index: 4, kind: output, shape index: {2}]
  %5 = xla_tuple %s2, %s3, %s4
  %s6 = sld [smem:[#allocation0]]
  $region42: #{tpu_custom_call.1} parent=0
    _
  %s8 = ssub.s32 1, %s6
  %s9 = scalar_select 0, %s8, %s6
  $region1: #{tpu_custom_call.1} parent=0
    #allocation2 [shape = 'u8[8192]{0}', space=vmem, size = 0x2000, scoped, tag = 'input window, operand 0, single buffered']
    #allocation3 [shape = 's32[1]{0}', space=sflag, size = 0x4, scoped, tag = 'scoped memory for tpu_custom_call.1']
    #allocation4 [shape = 's32[1]{0}', space=sflag, size = 0x4, scoped, tag = 'scoped memory for tpu_custom_call.1']
    #allocation5 [shape = 'u8[16384]{0}', space=vmem, size = 0x4000, scoped, tag = 'input window, operand 1, single buffered']
    #allocation6 [shape = 's32[1]{0}', space=sflag, size = 0x4, scoped, tag = 'scoped memory for tpu_custom_call.1']
    #allocation7 [shape = 'u8[8192]{0}', space=vmem, size = 0x2000, scoped, tag = 'output window, operand 0, single buffered']
    #allocation8 [shape = 'u8[8192]{0}', space=vmem, size = 0x2000, scoped, tag = 'output window, operand 1, single buffered']
    #allocation9 [shape = 's32[1]{0}', space=sflag, size = 0x4, scoped, tag = 'scoped memory for tpu_custom_call.1']
    #allocation10 [shape = 'u8[8192]{0}', space=vmem, size = 0x2000, scoped, tag = 'output window, operand 2, single buffered']
    %10 = vsyncpa [#allocation3], 0
    %11 = vsyncpa [#allocation6], 0
    %12 = vsyncpa [#allocation4], 0
    %13 = vsyncpa [#allocation9], 0
    // Predicated region
    $region2: #{tpu_custom_call.1} parent=1 // pred_check
      _
    $region3: #{tpu_custom_call.1} parent=1 // pred_check_branch
      %15 = sbr.rel (0) target = $region5
    $region4: #{tpu_custom_call.1} parent=1 // pred_region
      %s17 = ssub.s32 256, 256
      %18 = vsyncadd [#allocation3], %s17
      %s19 = sshll.u32 [#allocation2], 4
      %s20 = int_to_ptr.vmem [resolvable:$true] %s19
      %25 = dma.hbm_to_vmem [thread:$0]  %s0, 256, %s20, [#allocation3], 128, 128, 8
    $region5: #{tpu_custom_call.1} parent=1 // pred_fallthru
      _
    // Predicated region
    $region6: #{tpu_custom_call.1} parent=1 // pred_check
      _
    $region7: #{tpu_custom_call.1} parent=1 // pred_check_branch
      %27 = sbr.rel (0) target = $region9
    $region8: #{tpu_custom_call.1} parent=1 // pred_region
      %s29 = ssub.s32 512, 512
      %30 = vsyncadd [#allocation6], %s29
      %s31 = sshll.u32 [#allocation5], 4
      %s32 = int_to_ptr.vmem [resolvable:$true] %s31
      %37 = dma.hbm_to_vmem [thread:$0]  %s1, 512, %s32, [#allocation6], 128, 128, 8
    $region9: #{tpu_custom_call.1} parent=1 // pred_fallthru
      _
    // Predicated region
    $region10: #{tpu_custom_call.1} parent=1 // pred_check
      _
    $region11: #{tpu_custom_call.1} parent=1 // pred_check_branch
      %39 = sbr.rel (0) target = $region13
    $region12: #{tpu_custom_call.1} parent=1 // pred_region
      %40 = dma.done [#allocation3], 256
    $region13: #{tpu_custom_call.1} parent=1 // pred_fallthru
      _
    // Predicated region
    $region14: #{tpu_custom_call.1} parent=1 // pred_check
      _
    $region15: #{tpu_custom_call.1} parent=1 // pred_check_branch
      %42 = sbr.rel (0) target = $region17
    $region16: #{tpu_custom_call.1} parent=1 // pred_region
      %43 = dma.done [#allocation6], 512
    $region17: #{tpu_custom_call.1} parent=1 // pred_fallthru
      _
    %v44 = vld [vmem:[#allocation2] sm:$0xff]
    %v45 = vld [vmem:[#allocation2 + $0x8] sm:$0xff]
    %v46 = vld [vmem:[#allocation5] sm:$0xff]
    %v47 = vld [vmem:[#allocation5 + $0x8] sm:$0xff]
    %v48 = vld [vmem:[#allocation5 + $0x10] sm:$0xff]
    %v49 = vld [vmem:[#allocation5 + $0x18] sm:$0xff]
    %vm50 = vcmask 261120
    %v52 = vsel %vm50, %v44, 0
    %v55 = vsel %vm50, %v45, 0
    %57 = vmatprep.subr.mxu0 0.0
    %58 = vmatpush1.msra.mxu0 %v46
    %59 = vmatprep.subr.mxu0 0.0
    %60 = vmatpush1.msra.mxu0 %v47
    %61 = vmatprep.subr.mxu0 0.0
    %62 = vmatpush1.msra.mxu0 %v48
    %63 = vmatprep.subr.mxu0 0.0
    %64 = vmatpush1.msra.mxu0 %v49
    %65 = vmatprep.subr.mxu0 0.0
    %66 = vmatpush1.msra.mxu0 0.0
    %67 = vmatprep.subr.mxu0 0.0
    %68 = vmatpush1.msra.mxu0 0.0
    %69 = vmatprep.subr.mxu0 0.0
    %70 = vmatpush1.msra.mxu0 0.0
    %71 = vmatprep.subr.mxu0 0.0
    %72 = vmatpush1.msra.mxu0 0.0
    %73 = vmatprep.subr.mxu0 0.0
    %74 = vmatpush1.msra.mxu0 0.0
    %75 = vmatprep.subr.mxu0 0.0
    %76 = vmatpush1.msra.mxu0 0.0
    %77 = vmatprep.subr.mxu0 0.0
    %78 = vmatpush1.msra.mxu0 0.0
    %79 = vmatprep.subr.mxu0 0.0
    %80 = vmatpush1.msra.mxu0 0.0
    %81 = vmatprep.subr.mxu0 0.0
    %82 = vmatpush1.msra.mxu0 0.0
    %83 = vmatprep.subr.mxu0 0.0
    %84 = vmatpush1.msra.mxu0 0.0
    %85 = vmatprep.subr.mxu0 0.0
    %86 = vmatpush1.msra.mxu0 0.0
    %87 = vmatprep.subr.mxu0 0.0
    %88 = vmatpush1.msra.mxu0 0.0
    %89 = vmatprep.subr.mxu0 0.0
    %90 = vmatpush1.msra.mxu0 0.0
    %91 = vmatprep.subr.mxu0 0.0
    %92 = vmatpush1.msra.mxu0 0.0
    %93 = vmatprep.subr.mxu0 0.0
    %94 = vmatpush1.msra.mxu0 0.0
    %95 = vmatprep.subr.mxu0 0.0
    %96 = vmatpush1.msra.mxu0 0.0
    %97 = vmatprep.subr.mxu0 0.0
    %98 = vmatpush1.msra.mxu0 0.0
    %99 = vmatprep.subr.mxu0 0.0
    %100 = vmatpush1.msra.mxu0 0.0
    %101 = vmatprep.subr.mxu0 0.0
    %102 = vmatpush1.msra.mxu0 0.0
    %103 = vmatprep.subr.mxu0 0.0
    %104 = vmatpush1.msra.mxu0 0.0
    %105 = vmatprep.subr.mxu0 0.0
    %106 = vmatpush1.msra.mxu0 0.0
    %107 = vmatprep.subr.mxu0 0.0
    %108 = vmatpush1.msra.mxu0 0.0
    %109 = vmatprep.subr.mxu0 0.0
    %110 = vmatpush1.msra.mxu0 0.0
    %111 = vmatprep.subr.mxu0 0.0
    %112 = vmatpush1.msra.mxu0 0.0
    %113 = vmatprep.subr.mxu0 0.0
    %114 = vmatpush1.msra.mxu0 0.0
    %115 = vmatprep.subr.mxu0 0.0
    %116 = vmatpush1.msra.mxu0 0.0
    %117 = vmatprep.subr.mxu0 0.0
    %118 = vmatpush1.msra.mxu0 0.0
    %119 = vmatprep.subr.mxu0 0.0
    %120 = vmatpush1.msra.mxu0 0.0
    %121 = vmatprep.mubr.f32.mxu0 0.0
    %122 = vmatmul.mubr.f32.gmra.mrb[0].mxu0 %v52
    %v123 = vpop.f32.mrb[0].mxu0
    %v124 = vadd.f32 0.0, %v123
    %v125 = vpop.f32.mrb[0].mxu0
    %126 = vmatprep.mubr.f32.mxu0 0.0
    %127 = vmatmul.mubr.f32.gmra.mrb[0].mxu0 %v55
    %v128 = vpop.f32.mrb[0].mxu0
    %v129 = vadd.f32 0.0, %v128
    %v130 = vpop.f32.mrb[0].mxu0
    %131 = vdwg.mxu0
    %v132 = vmul.f32 %v124, 0.25
    %v133 = vmul.f32 %v129, 0.25
    %vm134 = vcmask 130048
    %135 = vst.msk [vmem:[#allocation7] sm:$0xff] %vm134, %v132
    %136 = vst.msk [vmem:[#allocation7 + $0x8] sm:$0xff] %vm134, %v133
    %139 = vrot.lane.b32.xlu0 %v124, 112
    %v140 = vpop.permute.xlu0 %139
    %141 = vrot.lane.b32.xlu0 %v129, 112
    %v142 = vpop.permute.xlu0 %141
    %145 = vst.msk [vmem:[#allocation8] sm:$0xff] %vm134, %v140
    %146 = vst.msk [vmem:[#allocation8 + $0x8] sm:$0xff] %vm134, %v142
    %147 = vrot.lane.b32.xlu0 %v124, 96
    %v148 = vpop.permute.xlu0 %147
    %149 = vrot.lane.b32.xlu0 %v129, 96
    %v150 = vpop.permute.xlu0 %149
    %153 = vst.msk [vmem:[#allocation10] sm:$0xff] %vm134, %v148
    %154 = vst.msk [vmem:[#allocation10 + $0x8] sm:$0xff] %vm134, %v150
    // Predicated region
    $region18: #{tpu_custom_call.1} parent=1 // pred_check
      _
    $region19: #{tpu_custom_call.1} parent=1 // pred_check_branch
      %156 = sbr.rel (0) target = $region21
    $region20: #{tpu_custom_call.1} parent=1 // pred_region
      %s158 = ssub.s32 256, 256
      %159 = vsyncadd [#allocation4], %s158
      %s160 = sshll.u32 [#allocation7], 4
      %s161 = int_to_ptr.vmem [resolvable:$true] %s160
      %166 = dma.vmem_to_hbm [thread:$0]  %s161, 256, %s2, [#allocation4], 128, 128, 8
    $region21: #{tpu_custom_call.1} parent=1 // pred_fallthru
      _
    // Predicated region
    $region22: #{tpu_custom_call.1} parent=1 // pred_check
      _
    $region23: #{tpu_custom_call.1} parent=1 // pred_check_branch
      %168 = sbr.rel (0) target = $region25
    $region24: #{tpu_custom_call.1} parent=1 // pred_region
      %s170 = ssub.s32 256, 256
      %171 = vsyncadd [#allocation9], %s170
      %s172 = sshll.u32 [#allocation8], 4
      %s173 = int_to_ptr.vmem [resolvable:$true] %s172
      %178 = dma.vmem_to_hbm [thread:$0]  %s173, 256, %s3, [#allocation9], 128, 128, 8
    $region25: #{tpu_custom_call.1} parent=1 // pred_fallthru
      _
    // Predicated region
    $region26: #{tpu_custom_call.1} parent=1 // pred_check
      _
    $region27: #{tpu_custom_call.1} parent=1 // pred_check_branch
      %180 = sbr.rel (0) target = $region29
    $region28: #{tpu_custom_call.1} parent=1 // pred_region
      %s182 = ssub.s32 256, 256
      %183 = vsyncadd [#allocation9], %s182
      %s184 = sshll.u32 [#allocation10], 4
      %s185 = int_to_ptr.vmem [resolvable:$true] %s184
      %190 = dma.vmem_to_hbm [thread:$0]  %s185, 256, %s4, [#allocation9], 128, 128, 8
    $region29: #{tpu_custom_call.1} parent=1 // pred_fallthru
      _
    // Predicated region
    $region30: #{tpu_custom_call.1} parent=1 // pred_check
      _
    $region31: #{tpu_custom_call.1} parent=1 // pred_check_branch
      %192 = sbr.rel (0) target = $region33
    $region32: #{tpu_custom_call.1} parent=1 // pred_region
      %193 = dma.done [#allocation4], 256
    $region33: #{tpu_custom_call.1} parent=1 // pred_fallthru
      _
    // Predicated region
    $region34: #{tpu_custom_call.1} parent=1 // pred_check
      _
    $region35: #{tpu_custom_call.1} parent=1 // pred_check_branch
      %195 = sbr.rel (0) target = $region37
    $region36: #{tpu_custom_call.1} parent=1 // pred_region
      %196 = dma.done [#allocation9], 256
    $region37: #{tpu_custom_call.1} parent=1 // pred_fallthru
      _
    // Predicated region
    $region38: #{tpu_custom_call.1} parent=1 // pred_check
      _
    $region39: #{tpu_custom_call.1} parent=1 // pred_check_branch
      %198 = sbr.rel (0) target = $region41
    $region40: #{tpu_custom_call.1} parent=1 // pred_region
      %199 = dma.done [#allocation9], 256
    $region41: #{tpu_custom_call.1} parent=1 // pred_fallthru
      _
    %200 = vsyncpa [#allocation3], 1
    %201 = vsyncpa [#allocation6], 1
    %202 = vsyncpa [#allocation4], 1
    %203 = vsyncpa [#allocation9], 1

</llo_original>
